<compile_context>
chip_gen: v7x
topology: tpu7x:2x2x1
jax: 0.10.0
libtpu: 0.0.40
codegen_flags: <defaults>
</compile_context>

<pallas_src>
import math
from functools import partial

import jax
import jax.numpy as jnp
from jax.experimental import pallas as pl
from jax.experimental.pallas import tpu as pltpu

LOG_STD_MAX = 2.0
LOG_STD_MIN = -5.0
_HALF_LOG_2PI = 0.5 * math.log(2.0 * math.pi)


def _round_up(x, m):
    return ((x + m - 1) // m) * m


def _cdiv(a, b):
    return (a + b - 1) // b


def sac_actor_kernel(
    obs_ref,            # [D, TB]   f32   (obs^T, batch on lanes)
    w1_ref, b1_ref,     # [H, D]    (bf16|f32), [H, 1] f32
    w2_ref, b2_ref,     # [H, H],              [H, 1]
    wh_ref, bh_ref,     # [2A, H],             [2A, 1]   fused fc_mean | fc_logstd
    scale_ref,          # [A, 1]    f32   action_scale
    bias_ref,           # [A, 1]    f32   action_bias
    eps_ref,            # [A, TB]   f32   N(0,1) noise for rsample() (transposed)
    act_ref,            # out: [A, TB]  action^T
    lp_ref,             # out: [1, TB]  log_prob
):
    wd = w1_ref.dtype  # weight dtype (bf16 default) -> MXU operand dtype

    # Two-layer MLP (sheeprl MLP default activation: ReLU), transposed form.
    # f32 accumulation; all elementwise math in f32.
    h = jnp.dot(w1_ref[...], obs_ref[...].astype(wd),
                preferred_element_type=jnp.float32)
    h = jnp.maximum(h + b1_ref[...], 0.0)                       # [H, TB]
    h = jnp.dot(w2_ref[...], h.astype(wd),
                preferred_element_type=jnp.float32)
    h = jnp.maximum(h + b2_ref[...], 0.0)                       # [H, TB]

    # Fused heads: one [2A, H] @ [H, TB] matmul.
    heads = jnp.dot(wh_ref[...], h.astype(wd),
                    preferred_element_type=jnp.float32) + bh_ref[...]   # [2A, TB]

    A = scale_ref.shape[0]
    mean = heads[:A, :]                                           # [A, TB]
    # Hard clamp, exactly as the module: std = clamp(log_std).exp()
    log_std = jnp.clip(heads[A:, :], LOG_STD_MIN, LOG_STD_MAX)
    std = jnp.exp(log_std)

    # rsample + tanh squash + rescale to env action bounds (all lane-dense).
    eps = eps_ref[...]
    x_t = mean + std * eps
    y_t = jnp.tanh(x_t)
    scale = scale_ref[...]
    act_ref[...] = y_t * scale + bias_ref[...]

    # Normal.log_prob(x_t) = -0.5*eps^2 - log_std - 0.5*log(2*pi)
    # + tanh-squash correction (Eq. 26, arXiv:1812.05905), reference form.
    log_prob = -0.5 * eps * eps - log_std - _HALF_LOG_2PI
    log_prob = log_prob - jnp.log(scale * (1.0 - y_t * y_t) + 1e-6)
    lp_ref[...] = jnp.sum(log_prob, axis=0, keepdims=True)        # [1, TB]


@partial(jax.jit, static_argnames=("block_b",))
def sac_actor_forward(obs, params, eps, *, block_b=1024):
    """obs: [B, D_obs], eps: [B, A] N(0,1) noise -> (action [B, A], log_prob [B, 1])."""
    B, D = obs.shape
    H = params["w1"].shape[0]
    A = params["action_scale"].shape[0]

    # Fuse the two head projections: [2A, H] weight / [2A, 1] bias.
    wh = jnp.concatenate([params["wm"], params["ws"]], axis=0)
    bh = jnp.concatenate([params["bm"], params["bs"]], axis=0)

    # Batch tile selection (batch is the LANE axis):
    #  - tiny batch: single tile, pad to 8 (block == full padded extent).
    #  - larger batch: 128-aligned lane tiles; cap at ~half the batch so v7x's
    #    two TensorCores each get work under dimension_semantics=("parallel",).
    if B <= 256:
        tb = _round_up(max(B, 8), 8)
        b_pad = tb
    else:
        tb = min(_round_up(block_b, 128), _round_up(_cdiv(B, 2), 128))
        tb = max(tb, 128)
        b_pad = _round_up(B, tb)

    obs_t = jnp.pad(obs, ((0, b_pad - B), (0, 0))).T   # [D, b_pad]
    eps_t = jnp.pad(eps, ((0, b_pad - B), (0, 0))).T   # [A, b_pad]

    def col_spec(rows):            # blocked over the batch (lane) grid axis
        return pl.BlockSpec((rows, tb), lambda i: (0, i))

    def res_spec(shape):           # VMEM-resident across all grid steps
        return pl.BlockSpec(shape, lambda i: (0, 0))

    act_t, lp_t = pl.pallas_call(
        sac_actor_kernel,
        out_shape=(
            jax.ShapeDtypeStruct((A, b_pad), jnp.float32),
            jax.ShapeDtypeStruct((1, b_pad), jnp.float32),
        ),
        grid=(b_pad // tb,),
        in_specs=[
            col_spec(D),
            res_spec((H, D)), res_spec((H, 1)),
            res_spec((H, H)), res_spec((H, 1)),
            res_spec((2 * A, H)), res_spec((2 * A, 1)),
            res_spec((A, 1)), res_spec((A, 1)),
            col_spec(A),
        ],
        out_specs=[col_spec(A), col_spec(1)],
        compiler_params=pltpu.CompilerParams(
            # Batch tiles are independent -> megacore sharding on v7x
            # (measured ~neutral on single-TC v5e/v6e, harmless).
            dimension_semantics=("parallel",),
        ),
    )(obs_t, params["w1"], params["b1"], params["w2"], params["b2"],
      wh, bh, params["action_scale"], params["action_bias"], eps_t)

    action = act_t.T[:B]           # [B, A]
    log_prob = lp_t.T[:B]          # [B, 1]
    return action, log_prob


def init_params(key, obs_dim, action_dim, hidden_size,
                action_low=-1.0, action_high=1.0, weight_dtype=jnp.bfloat16):
    """Deterministic synthetic init, PyTorch Linear convention: W [out, in], b [out, 1].

    bf16 weights by default (MXU-native on all generations); biases stay f32
    (added post f32 accumulation).
    """
    def linear(k, fan_in, fan_out):
        kw, kb = jax.random.split(k)
        bound = 1.0 / math.sqrt(fan_in)
        w = jax.random.uniform(kw, (fan_out, fan_in), jnp.float32, -bound, bound)
        b = jax.random.uniform(kb, (fan_out, 1), jnp.float32, -bound, bound)
        return w.astype(weight_dtype), b

    k1, k2, k3, k4 = jax.random.split(key, 4)
    w1, b1 = linear(k1, obs_dim, hidden_size)
    w2, b2 = linear(k2, hidden_size, hidden_size)
    wm, bm = linear(k3, hidden_size, action_dim)
    ws, bs = linear(k4, hidden_size, action_dim)
    scale = jnp.full((action_dim, 1), (action_high - action_low) / 2.0, jnp.float32)
    bias = jnp.full((action_dim, 1), (action_high + action_low) / 2.0, jnp.float32)
    return dict(w1=w1, b1=b1, w2=w2, b2=b2, wm=wm, bm=bm, ws=ws, bs=bs,
                action_scale=scale, action_bias=bias)


def reference_forward(obs, p, eps):
    """Pure-JAX reference mirroring the PyTorch forward (row-major layout).

    Uses the same cast-to-weight-dtype / f32-accumulation convention as the
    kernel so the bf16-weight default can be checked too.
    """
    wd = p["w1"].dtype
    h = jnp.maximum(
        jnp.dot(obs.astype(wd), p["w1"].T, preferred_element_type=jnp.float32)
        + p["b1"].T, 0.0)
    h = jnp.maximum(
        jnp.dot(h.astype(wd), p["w2"].T, preferred_element_type=jnp.float32)
        + p["b2"].T, 0.0)
    mean = jnp.dot(h.astype(wd), p["wm"].T, preferred_element_type=jnp.float32) + p["bm"].T
    log_std = jnp.clip(
        jnp.dot(h.astype(wd), p["ws"].T, preferred_element_type=jnp.float32) + p["bs"].T,
        LOG_STD_MIN, LOG_STD_MAX)
    std = jnp.exp(log_std)
    x_t = mean + std * eps
    y_t = jnp.tanh(x_t)
    action = y_t * p["action_scale"].T + p["action_bias"].T
    log_prob = -0.5 * eps * eps - log_std - _HALF_LOG_2PI
    log_prob = log_prob - jnp.log(p["action_scale"].T * (1.0 - y_t * y_t) + 1e-6)
    return action, jnp.sum(log_prob, axis=-1, keepdims=True)


if __name__ == "__main__":
    B, OBS_DIM, ACTION_DIM, HIDDEN = 16, 16, 8, 256

    key = jax.random.PRNGKey(0)
    k_params, k_obs, k_eps = jax.random.split(key, 3)

    obs = jax.random.normal(k_obs, (B, OBS_DIM), jnp.float32)
    # rsample() noise generated outside the kernel (deterministic).
    eps = jax.random.normal(k_eps, (B, ACTION_DIM), jnp.float32)

    # --- bf16 weights (default): MXU-native path on v5e/v6e/v7x -------------
    params = init_params(k_params, OBS_DIM, ACTION_DIM, HIDDEN)
    action, log_prob = sac_actor_forward(obs, params, eps)
    jax.block_until_ready((action, log_prob))

    a_ref, lp_ref = reference_forward(obs, params, eps)
    assert action.shape == (B, ACTION_DIM) and log_prob.shape == (B, 1)
    assert jnp.all(jnp.isfinite(action)) and jnp.all(jnp.isfinite(log_prob))
    assert jnp.allclose(action, a_ref, atol=1e-2, rtol=1e-2)
    assert jnp.allclose(log_prob, lp_ref, atol=5e-2, rtol=5e-2)

    # --- f32 weights: bit-tight parity with the reference -------------------
    params_f32 = init_params(k_params, OBS_DIM, ACTION_DIM, HIDDEN,
                             weight_dtype=jnp.float32)
    a32, lp32 = sac_actor_forward(obs, params_f32, eps)
    jax.block_until_ready((a32, lp32))

    a32_ref, lp32_ref = reference_forward(obs, params_f32, eps)
    assert jnp.allclose(a32, a32_ref, atol=1e-5, rtol=1e-5)
    assert jnp.allclose(lp32, lp32_ref, atol=1e-4, rtol=1e-4)

    # --- multi-tile grid path: B=300 -> pad to 384, 128-wide lane tiles, grid=(3,) ---
    B2 = 300
    kb_obs, kb_eps = jax.random.split(jax.random.PRNGKey(1))
    obs2 = jax.random.normal(kb_obs, (B2, OBS_DIM), jnp.float32)
    eps2 = jax.random.normal(kb_eps, (B2, ACTION_DIM), jnp.float32)
    a2, lp2 = sac_actor_forward(obs2, params, eps2, block_b=128)
    jax.block_until_ready((a2, lp2))

    a2_ref, lp2_ref = reference_forward(obs2, params, eps2)
    assert a2.shape == (B2, ACTION_DIM) and lp2.shape == (B2, 1)
    assert jnp.allclose(a2, a2_ref, atol=1e-2, rtol=1e-2)
    assert jnp.allclose(lp2, lp2_ref, atol=5e-2, rtol=5e-2)

    print("KERNEL_OK")
</pallas_src>

<mosaic_0001>
module attributes {stable_mosaic.version = 11 : i64} {
  func.func @sac_actor_kernel(%arg0: i32, %arg1: memref<16x16xf32, #tpu.memory_space<vmem>>, %arg2: memref<256x16xbf16, #tpu.memory_space<vmem>>, %arg3: memref<256x1xf32, #tpu.memory_space<vmem>>, %arg4: memref<256x256xbf16, #tpu.memory_space<vmem>>, %arg5: memref<256x1xf32, #tpu.memory_space<vmem>>, %arg6: memref<16x256xbf16, #tpu.memory_space<vmem>>, %arg7: memref<16x1xf32, #tpu.memory_space<vmem>>, %arg8: memref<8x1xf32, #tpu.memory_space<vmem>>, %arg9: memref<8x1xf32, #tpu.memory_space<vmem>>, %arg10: memref<8x16xf32, #tpu.memory_space<vmem>>, %arg11: memref<8x16xf32, #tpu.memory_space<vmem>>, %arg12: memref<1x16xf32, #tpu.memory_space<vmem>>) attributes {dimension_semantics = [#tpu.dimension_semantics<parallel>], iteration_bounds = array<i64: 1>, scalar_prefetch = 0 : i64, scratch_operands = 0 : i64, tpu.core_type = #tpu.core_type<tc>, window_params = [{transform_indices = @transform_0, window_bounds = array<i64: 16, 16>}, {pipeline_mode = #tpu.pipeline_mode<synchronous>, transform_indices = @transform_1, window_bounds = array<i64: 256, 16>}, {pipeline_mode = #tpu.pipeline_mode<synchronous>, transform_indices = @transform_2, window_bounds = array<i64: 256, 1>}, {pipeline_mode = #tpu.pipeline_mode<synchronous>, transform_indices = @transform_3, window_bounds = array<i64: 256, 256>}, {pipeline_mode = #tpu.pipeline_mode<synchronous>, transform_indices = @transform_4, window_bounds = array<i64: 256, 1>}, {pipeline_mode = #tpu.pipeline_mode<synchronous>, transform_indices = @transform_5, window_bounds = array<i64: 16, 256>}, {pipeline_mode = #tpu.pipeline_mode<synchronous>, transform_indices = @transform_6, window_bounds = array<i64: 16, 1>}, {pipeline_mode = #tpu.pipeline_mode<synchronous>, transform_indices = @transform_7, window_bounds = array<i64: 8, 1>}, {pipeline_mode = #tpu.pipeline_mode<synchronous>, transform_indices = @transform_8, window_bounds = array<i64: 8, 1>}, {transform_indices = @transform_9, window_bounds = array<i64: 8, 16>}, {transform_indices = @transform_10, window_bounds = array<i64: 8, 16>}, {transform_indices = @transform_11, window_bounds = array<i64: 1, 16>}]} {
    %c0 = arith.constant 0 : index
    %c0_0 = arith.constant 0 : index
    %0 = vector.load %arg2[%c0, %c0_0] : memref<256x16xbf16, #tpu.memory_space<vmem>>, vector<256x16xbf16>
    %c0_1 = arith.constant 0 : index
    %c0_2 = arith.constant 0 : index
    %1 = vector.load %arg1[%c0_1, %c0_2] : memref<16x16xf32, #tpu.memory_space<vmem>>, vector<16x16xf32>
    %2 = arith.truncf %1 : vector<16x16xf32> to vector<16x16xbf16>
    %cst = arith.constant dense<0.000000e+00> : vector<256x16xf32>
    %3 = tpu.matmul %0, %2, %cst {dimension_numbers = #tpu.dot_dimension_numbers<[1], [0], [0], [1], [0, 0, 1, 1], [], []>} : vector<256x16xbf16>, vector<16x16xbf16>, vector<256x16xf32> -> vector<256x16xf32>
    %c0_3 = arith.constant 0 : index
    %c0_4 = arith.constant 0 : index
    %4 = vector.load %arg3[%c0_3, %c0_4] : memref<256x1xf32, #tpu.memory_space<vmem>>, vector<256x1xf32>
    %5 = vector.broadcast %4 : vector<256x1xf32> to vector<256x16xf32>
    %6 = arith.addf %3, %5 : vector<256x16xf32>
    %cst_5 = arith.constant 0.000000e+00 : f32
    %7 = vector.broadcast %cst_5 : f32 to vector<256x16xf32>
    %8 = arith.maximumf %6, %7 : vector<256x16xf32>
    %c0_6 = arith.constant 0 : index
    %c0_7 = arith.constant 0 : index
    %9 = vector.load %arg4[%c0_6, %c0_7] : memref<256x256xbf16, #tpu.memory_space<vmem>>, vector<256x256xbf16>
    %10 = arith.truncf %8 : vector<256x16xf32> to vector<256x16xbf16>
    %cst_8 = arith.constant dense<0.000000e+00> : vector<256x16xf32>
    %11 = tpu.matmul %9, %10, %cst_8 {dimension_numbers = #tpu.dot_dimension_numbers<[1], [0], [0], [1], [0, 0, 1, 1], [], []>} : vector<256x256xbf16>, vector<256x16xbf16>, vector<256x16xf32> -> vector<256x16xf32>
    %c0_9 = arith.constant 0 : index
    %c0_10 = arith.constant 0 : index
    %12 = vector.load %arg5[%c0_9, %c0_10] : memref<256x1xf32, #tpu.memory_space<vmem>>, vector<256x1xf32>
    %13 = vector.broadcast %12 : vector<256x1xf32> to vector<256x16xf32>
    %14 = arith.addf %11, %13 : vector<256x16xf32>
    %cst_11 = arith.constant 0.000000e+00 : f32
    %15 = vector.broadcast %cst_11 : f32 to vector<256x16xf32>
    %16 = arith.maximumf %14, %15 : vector<256x16xf32>
    %c0_12 = arith.constant 0 : index
    %c0_13 = arith.constant 0 : index
    %17 = vector.load %arg6[%c0_12, %c0_13] : memref<16x256xbf16, #tpu.memory_space<vmem>>, vector<16x256xbf16>
    %18 = arith.truncf %16 : vector<256x16xf32> to vector<256x16xbf16>
    %cst_14 = arith.constant dense<0.000000e+00> : vector<16x16xf32>
    %19 = tpu.matmul %17, %18, %cst_14 {dimension_numbers = #tpu.dot_dimension_numbers<[1], [0], [0], [1], [0, 0, 1, 1], [], []>} : vector<16x256xbf16>, vector<256x16xbf16>, vector<16x16xf32> -> vector<16x16xf32>
    %c0_15 = arith.constant 0 : index
    %c0_16 = arith.constant 0 : index
    %20 = vector.load %arg7[%c0_15, %c0_16] : memref<16x1xf32, #tpu.memory_space<vmem>>, vector<16x1xf32>
    %21 = vector.broadcast %20 : vector<16x1xf32> to vector<16x16xf32>
    %22 = arith.addf %19, %21 : vector<16x16xf32>
    %23 = vector.extract_strided_slice %22 {offsets = [0, 0], sizes = [8, 16], strides = [1, 1]} : vector<16x16xf32> to vector<8x16xf32>
    %24 = vector.extract_strided_slice %22 {offsets = [8, 0], sizes = [8, 16], strides = [1, 1]} : vector<16x16xf32> to vector<8x16xf32>
    %cst_17 = arith.constant -5.000000e+00 : f32
    %cst_18 = arith.constant 2.000000e+00 : f32
    %25 = vector.broadcast %cst_17 : f32 to vector<8x16xf32>
    %26 = arith.maximumf %25, %24 : vector<8x16xf32>
    %27 = vector.broadcast %cst_18 : f32 to vector<8x16xf32>
    %28 = arith.minimumf %27, %26 : vector<8x16xf32>
    %29 = math.exp %28 : vector<8x16xf32>
    %c0_19 = arith.constant 0 : index
    %c0_20 = arith.constant 0 : index
    %30 = vector.load %arg10[%c0_19, %c0_20] : memref<8x16xf32, #tpu.memory_space<vmem>>, vector<8x16xf32>
    %31 = arith.mulf %29, %30 : vector<8x16xf32>
    %32 = arith.addf %23, %31 : vector<8x16xf32>
    %33 = math.tanh %32 : vector<8x16xf32>
    %c0_21 = arith.constant 0 : index
    %c0_22 = arith.constant 0 : index
    %34 = vector.load %arg8[%c0_21, %c0_22] : memref<8x1xf32, #tpu.memory_space<vmem>>, vector<8x1xf32>
    %35 = vector.broadcast %34 : vector<8x1xf32> to vector<8x16xf32>
    %36 = arith.mulf %33, %35 : vector<8x16xf32>
    %c0_23 = arith.constant 0 : index
    %c0_24 = arith.constant 0 : index
    %37 = vector.load %arg9[%c0_23, %c0_24] : memref<8x1xf32, #tpu.memory_space<vmem>>, vector<8x1xf32>
    %38 = vector.broadcast %37 : vector<8x1xf32> to vector<8x16xf32>
    %39 = arith.addf %36, %38 : vector<8x16xf32>
    %c0_25 = arith.constant 0 : index
    %c0_26 = arith.constant 0 : index
    %40 = vector.load %arg11[%c0_25, %c0_26] : memref<8x16xf32, #tpu.memory_space<vmem>>, vector<8x16xf32>
    tpu.vector_store %arg11[%c0_25, %c0_26], %39 {strides = array<i32>} : memref<8x16xf32, #tpu.memory_space<vmem>>, vector<8x16xf32>,
    %cst_27 = arith.constant -5.000000e-01 : f32
    %41 = vector.broadcast %cst_27 : f32 to vector<8x16xf32>
    %42 = arith.mulf %41, %30 : vector<8x16xf32>
    %43 = arith.mulf %42, %30 : vector<8x16xf32>
    %44 = arith.subf %43, %28 : vector<8x16xf32>
    %cst_28 = arith.constant 0.918938517 : f32
    %45 = vector.broadcast %cst_28 : f32 to vector<8x16xf32>
    %46 = arith.subf %44, %45 : vector<8x16xf32>
    %47 = arith.mulf %33, %33 : vector<8x16xf32>
    %cst_29 = arith.constant 1.000000e+00 : f32
    %48 = vector.broadcast %cst_29 : f32 to vector<8x16xf32>
    %49 = arith.subf %48, %47 : vector<8x16xf32>
    %50 = vector.broadcast %34 : vector<8x1xf32> to vector<8x16xf32>
    %51 = arith.mulf %50, %49 : vector<8x16xf32>
    %cst_30 = arith.constant 9.99999997E-7 : f32
    %52 = vector.broadcast %cst_30 : f32 to vector<8x16xf32>
    %53 = arith.addf %51, %52 : vector<8x16xf32>
    %54 = math.log %53 : vector<8x16xf32>
    %55 = arith.subf %46, %54 : vector<8x16xf32>
    %cst_31 = arith.constant dense<0.000000e+00> : vector<16xf32>
    %56 = vector.multi_reduction <add>, %55, %cst_31 [0] : vector<8x16xf32> to vector<16xf32>
    %57 = vector.shape_cast %56 : vector<16xf32> to vector<1x16xf32>
    %c0_32 = arith.constant 0 : index
    %c0_33 = arith.constant 0 : index
    %58 = vector.load %arg12[%c0_32, %c0_33] : memref<1x16xf32, #tpu.memory_space<vmem>>, vector<1x16xf32>
    tpu.vector_store %arg12[%c0_32, %c0_33], %57 {strides = array<i32>} : memref<1x16xf32, #tpu.memory_space<vmem>>, vector<1x16xf32>,
    return
  }
  func.func @transform_0(%arg0: i32) -> (i32, i32) {
    %c0_i32 = arith.constant 0 : i32
    %c0_i32_0 = arith.constant 0 : i32
    return %c0_i32, %arg0 : i32, i32
  }
  func.func @transform_1(%arg0: i32) -> (i32, i32) {
    %c0_i32 = arith.constant 0 : i32
    %c0_i32_0 = arith.constant 0 : i32
    %c0_i32_1 = arith.constant 0 : i32
    return %c0_i32, %c0_i32_0 : i32, i32
  }
  func.func @transform_2(%arg0: i32) -> (i32, i32) {
    %c0_i32 = arith.constant 0 : i32
    %c0_i32_0 = arith.constant 0 : i32
    %c0_i32_1 = arith.constant 0 : i32
    return %c0_i32, %c0_i32_0 : i32, i32
  }
  func.func @transform_3(%arg0: i32) -> (i32, i32) {
    %c0_i32 = arith.constant 0 : i32
    %c0_i32_0 = arith.constant 0 : i32
    %c0_i32_1 = arith.constant 0 : i32
    return %c0_i32, %c0_i32_0 : i32, i32
  }
  func.func @transform_4(%arg0: i32) -> (i32, i32) {
    %c0_i32 = arith.constant 0 : i32
    %c0_i32_0 = arith.constant 0 : i32
    %c0_i32_1 = arith.constant 0 : i32
    return %c0_i32, %c0_i32_0 : i32, i32
  }
  func.func @transform_5(%arg0: i32) -> (i32, i32) {
    %c0_i32 = arith.constant 0 : i32
    %c0_i32_0 = arith.constant 0 : i32
    %c0_i32_1 = arith.constant 0 : i32
    return %c0_i32, %c0_i32_0 : i32, i32
  }
  func.func @transform_6(%arg0: i32) -> (i32, i32) {
    %c0_i32 = arith.constant 0 : i32
    %c0_i32_0 = arith.constant 0 : i32
    %c0_i32_1 = arith.constant 0 : i32
    return %c0_i32, %c0_i32_0 : i32, i32
  }
  func.func @transform_7(%arg0: i32) -> (i32, i32) {
    %c0_i32 = arith.constant 0 : i32
    %c0_i32_0 = arith.constant 0 : i32
    %c0_i32_1 = arith.constant 0 : i32
    return %c0_i32, %c0_i32_0 : i32, i32
  }
  func.func @transform_8(%arg0: i32) -> (i32, i32) {
    %c0_i32 = arith.constant 0 : i32
    %c0_i32_0 = arith.constant 0 : i32
    %c0_i32_1 = arith.constant 0 : i32
    return %c0_i32, %c0_i32_0 : i32, i32
  }
  func.func @transform_9(%arg0: i32) -> (i32, i32) {
    %c0_i32 = arith.constant 0 : i32
    %c0_i32_0 = arith.constant 0 : i32
    return %c0_i32, %arg0 : i32, i32
  }
  func.func @transform_10(%arg0: i32) -> (i32, i32) {
    %c0_i32 = arith.constant 0 : i32
    %c0_i32_0 = arith.constant 0 : i32
    return %c0_i32, %arg0 : i32, i32
  }
  func.func @transform_11(%arg0: i32) -> (i32, i32) {
    %c0_i32 = arith.constant 0 : i32
    %c0_i32_0 = arith.constant 0 : i32
    return %c0_i32, %arg0 : i32, i32
  }
}

</mosaic_0001>

<llo_original>
// kernel: sac_actor_forward.1
$region0: #{sac_actor_forward.1}
  #allocation0 [shape = 'u32[]', space=smem, size = 0x4, offset = 0x4, fixed_abs, tag = 'smem constant byte address 0x4 - core index']
  #allocation1 [shape = 'u32[144,128]{1,0:T(1,128)}', space=vmem, size = 0x12000, scoped, tag = 'internal scratch']
  %s0 = inlined_call_operand.vmem [shape: f32[16,16], index: 0, kind: input, shape index: {}]
  %s1 = inlined_call_operand.vmem [shape: bf16[256,16], index: 1, kind: input, shape index: {}]
  %s2 = inlined_call_operand.vmem [shape: f32[256,1], index: 2, kind: input, shape index: {}]
  %s3 = inlined_call_operand.vmem [shape: bf16[256,256], index: 3, kind: input, shape index: {}]
  %s4 = inlined_call_operand.vmem [shape: f32[256,1], index: 4, kind: input, shape index: {}]
  %s5 = inlined_call_operand.vmem [shape: bf16[16,256], index: 5, kind: input, shape index: {}]
  %s6 = inlined_call_operand.vmem [shape: f32[16,1], index: 6, kind: input, shape index: {}]
  %s7 = inlined_call_operand.vmem [shape: f32[8,1], index: 7, kind: input, shape index: {}]
  %s8 = inlined_call_operand.vmem [shape: f32[8,1], index: 8, kind: input, shape index: {}]
  %s9 = inlined_call_operand.vmem [shape: f32[8,16], index: 9, kind: input, shape index: {}]
  %s10 = inlined_call_operand.hbm [shape: f32[8,16], index: 10, kind: output, shape index: {0}]
  %s11 = inlined_call_operand.hbm [shape: f32[1,16], index: 11, kind: output, shape index: {1}]
  %12 = xla_tuple %s10, %s11
  %s13 = sld [smem:[#allocation0]]
  $region58: #{sac_actor_forward.1} parent=0
    _
  %s15 = ssub.s32 1, %s13
  %s16 = scalar_select 0, %s15, %s13
  $region1: #{sac_actor_forward.1} parent=0
    #allocation2 [shape = 'u8[4096]{0}', space=vmem, size = 0x1000, scoped, tag = 'output window, operand 0, single buffered']
    #allocation3 [shape = 's32[1]{0}', space=sflag, size = 0x4, scoped, tag = 'scoped memory for sac_actor_forward.1']
    #allocation4 [shape = 'u8[512]{0}', space=vmem, size = 0x400, scoped, tag = 'output window, operand 1, single buffered']
    #allocation5 [shape = 's32[1]{0}', space=sflag, size = 0x4, scoped, tag = 'scoped memory for sac_actor_forward.1']
    %17 = vsyncpa [#allocation3], 0
    %18 = vsyncpa [#allocation5], 0
    // Predicated region
    $region2: #{sac_actor_forward.1} parent=1 // pred_check
      _
    $region3: #{sac_actor_forward.1} parent=1 // pred_check_branch
      %20 = sbr.rel (0) target = $region5
    $region4: #{sac_actor_forward.1} parent=1 // pred_region
      _
    $region5: #{sac_actor_forward.1} parent=1 // pred_fallthru
      _
    // Predicated region
    $region6: #{sac_actor_forward.1} parent=1 // pred_check
      _
    $region7: #{sac_actor_forward.1} parent=1 // pred_check_branch
      %22 = sbr.rel (0) target = $region9
    $region8: #{sac_actor_forward.1} parent=1 // pred_region
      _
    $region9: #{sac_actor_forward.1} parent=1 // pred_fallthru
      _
    // Predicated region
    $region10: #{sac_actor_forward.1} parent=1 // pred_check
      _
    $region11: #{sac_actor_forward.1} parent=1 // pred_check_branch
      %24 = sbr.rel (0) target = $region13
    $region12: #{sac_actor_forward.1} parent=1 // pred_region
      _
    $region13: #{sac_actor_forward.1} parent=1 // pred_fallthru
      _
    // Predicated region
    $region14: #{sac_actor_forward.1} parent=1 // pred_check
      _
    $region15: #{sac_actor_forward.1} parent=1 // pred_check_branch
      %26 = sbr.rel (0) target = $region17
    $region16: #{sac_actor_forward.1} parent=1 // pred_region
      _
    $region17: #{sac_actor_forward.1} parent=1 // pred_fallthru
      _
    // Predicated region
    $region18: #{sac_actor_forward.1} parent=1 // pred_check
      _
    $region19: #{sac_actor_forward.1} parent=1 // pred_check_branch
      %28 = sbr.rel (0) target = $region21
    $region20: #{sac_actor_forward.1} parent=1 // pred_region
      _
    $region21: #{sac_actor_forward.1} parent=1 // pred_fallthru
      _
    // Predicated region
    $region22: #{sac_actor_forward.1} parent=1 // pred_check
      _
    $region23: #{sac_actor_forward.1} parent=1 // pred_check_branch
      %30 = sbr.rel (0) target = $region25
    $region24: #{sac_actor_forward.1} parent=1 // pred_region
      _
    $region25: #{sac_actor_forward.1} parent=1 // pred_fallthru
      _
    // Predicated region
    $region26: #{sac_actor_forward.1} parent=1 // pred_check
      _
    $region27: #{sac_actor_forward.1} parent=1 // pred_check_branch
      %32 = sbr.rel (0) target = $region29
    $region28: #{sac_actor_forward.1} parent=1 // pred_region
      _
    $region29: #{sac_actor_forward.1} parent=1 // pred_fallthru
      _
    // Predicated region
    $region30: #{sac_actor_forward.1} parent=1 // pred_check
      _
    $region31: #{sac_actor_forward.1} parent=1 // pred_check_branch
      %34 = sbr.rel (0) target = $region33
    $region32: #{sac_actor_forward.1} parent=1 // pred_region
      _
    $region33: #{sac_actor_forward.1} parent=1 // pred_fallthru
      _
    // Predicated region
    $region34: #{sac_actor_forward.1} parent=1 // pred_check
      _
    $region35: #{sac_actor_forward.1} parent=1 // pred_check_branch
      %36 = sbr.rel (0) target = $region37
    $region36: #{sac_actor_forward.1} parent=1 // pred_region
      _
    $region37: #{sac_actor_forward.1} parent=1 // pred_fallthru
      _
    // Predicated region
    $region38: #{sac_actor_forward.1} parent=1 // pred_check
      _
    $region39: #{sac_actor_forward.1} parent=1 // pred_check_branch
      %38 = sbr.rel (0) target = $region41
    $region40: #{sac_actor_forward.1} parent=1 // pred_region
      _
    $region41: #{sac_actor_forward.1} parent=1 // pred_fallthru
      _
    %v40 = vld [vmem:[%s1] sm:$0xf]
    %v41 = vld [vmem:[%s1 + $0x4] sm:$0xf]
    %v42 = vld [vmem:[%s1 + $0x8] sm:$0xf]
    %v43 = vld [vmem:[%s1 + $0xc] sm:$0xf]
    %v44 = vld [vmem:[%s1 + $0x10] sm:$0xf]
    %v45 = vld [vmem:[%s1 + $0x14] sm:$0xf]
    %v46 = vld [vmem:[%s1 + $0x18] sm:$0xf]
    %v47 = vld [vmem:[%s1 + $0x1c] sm:$0xf]
    %v48 = vld [vmem:[%s1 + $0x20] sm:$0xf]
    %v49 = vld [vmem:[%s1 + $0x24] sm:$0xf]
    %v50 = vld [vmem:[%s1 + $0x28] sm:$0xf]
    %v51 = vld [vmem:[%s1 + $0x2c] sm:$0xf]
    %v52 = vld [vmem:[%s1 + $0x30] sm:$0xf]
    %v53 = vld [vmem:[%s1 + $0x34] sm:$0xf]
    %v54 = vld [vmem:[%s1 + $0x38] sm:$0xf]
    %v55 = vld [vmem:[%s1 + $0x3c] sm:$0xf]
    %v56 = vld [vmem:[%s1 + $0x40] sm:$0xf]
    %v57 = vld [vmem:[%s1 + $0x44] sm:$0xf]
    %v58 = vld [vmem:[%s1 + $0x48] sm:$0xf]
    %v59 = vld [vmem:[%s1 + $0x4c] sm:$0xf]
    %v60 = vld [vmem:[%s1 + $0x50] sm:$0xf]
    %v61 = vld [vmem:[%s1 + $0x54] sm:$0xf]
    %v62 = vld [vmem:[%s1 + $0x58] sm:$0xf]
    %v63 = vld [vmem:[%s1 + $0x5c] sm:$0xf]
    %v64 = vld [vmem:[%s1 + $0x60] sm:$0xf]
    %v65 = vld [vmem:[%s1 + $0x64] sm:$0xf]
    %v66 = vld [vmem:[%s1 + $0x68] sm:$0xf]
    %v67 = vld [vmem:[%s1 + $0x6c] sm:$0xf]
    %v68 = vld [vmem:[%s1 + $0x70] sm:$0xf]
    %v69 = vld [vmem:[%s1 + $0x74] sm:$0xf]
    %v70 = vld [vmem:[%s1 + $0x78] sm:$0xf]
    %v71 = vld [vmem:[%s1 + $0x7c] sm:$0xf]
    %v72 = vld [vmem:[%s0] sm:$0xff]
    %v73 = vld [vmem:[%s0 + $0x8] sm:$0xff]
    %v74 = vpack.c.bf16 %v73, %v72
    %v75 = vld [vmem:[%s2] sm:$0xff]
    %v76 = vld [vmem:[%s2 + $0x8] sm:$0xff]
    %v77 = vld [vmem:[%s2 + $0x10] sm:$0xff]
    %v78 = vld [vmem:[%s2 + $0x18] sm:$0xff]
    %v79 = vld [vmem:[%s2 + $0x20] sm:$0xff]
    %v80 = vld [vmem:[%s2 + $0x28] sm:$0xff]
    %v81 = vld [vmem:[%s2 + $0x30] sm:$0xff]
    %v82 = vld [vmem:[%s2 + $0x38] sm:$0xff]
    %v83 = vld [vmem:[%s2 + $0x40] sm:$0xff]
    %v84 = vld [vmem:[%s2 + $0x48] sm:$0xff]
    %v85 = vld [vmem:[%s2 + $0x50] sm:$0xff]
    %v86 = vld [vmem:[%s2 + $0x58] sm:$0xff]
    %v87 = vld [vmem:[%s2 + $0x60] sm:$0xff]
    %v88 = vld [vmem:[%s2 + $0x68] sm:$0xff]
    %v89 = vld [vmem:[%s2 + $0x70] sm:$0xff]
    %v90 = vld [vmem:[%s2 + $0x78] sm:$0xff]
    %v91 = vld [vmem:[%s2 + $0x80] sm:$0xff]
    %v92 = vld [vmem:[%s2 + $0x88] sm:$0xff]
    %v93 = vld [vmem:[%s2 + $0x90] sm:$0xff]
    %v94 = vld [vmem:[%s2 + $0x98] sm:$0xff]
    %v95 = vld [vmem:[%s2 + $0xa0] sm:$0xff]
    %v96 = vld [vmem:[%s2 + $0xa8] sm:$0xff]
    %v97 = vld [vmem:[%s2 + $0xb0] sm:$0xff]
    %v98 = vld [vmem:[%s2 + $0xb8] sm:$0xff]
    %v99 = vld [vmem:[%s2 + $0xc0] sm:$0xff]
    %v100 = vld [vmem:[%s2 + $0xc8] sm:$0xff]
    %v101 = vld [vmem:[%s2 + $0xd0] sm:$0xff]
    %v102 = vld [vmem:[%s2 + $0xd8] sm:$0xff]
    %v103 = vld [vmem:[%s2 + $0xe0] sm:$0xff]
    %v104 = vld [vmem:[%s2 + $0xe8] sm:$0xff]
    %v105 = vld [vmem:[%s2 + $0xf0] sm:$0xff]
    %v106 = vld [vmem:[%s2 + $0xf8] sm:$0xff]
    %108 = vset.pattern.permute.xlu0 0
    %109 = vperm.xlu0 %108, %v75
    %v110 = vpop.permute.xlu0 %109
    %113 = vset.pattern.permute.xlu0 0
    %114 = vperm.xlu0 %113, %v76
    %v115 = vpop.permute.xlu0 %114
    %118 = vset.pattern.permute.xlu0 0
    %119 = vperm.xlu0 %118, %v77
    %v120 = vpop.permute.xlu0 %119
    %123 = vset.pattern.permute.xlu0 0
    %124 = vperm.xlu0 %123, %v78
    %v125 = vpop.permute.xlu0 %124
    %128 = vset.pattern.permute.xlu0 0
    %129 = vperm.xlu0 %128, %v79
    %v130 = vpop.permute.xlu0 %129
    %133 = vset.pattern.permute.xlu0 0
    %134 = vperm.xlu0 %133, %v80
    %v135 = vpop.permute.xlu0 %134
    %138 = vset.pattern.permute.xlu0 0
    %139 = vperm.xlu0 %138, %v81
    %v140 = vpop.permute.xlu0 %139
    %143 = vset.pattern.permute.xlu0 0
    %144 = vperm.xlu0 %143, %v82
    %v145 = vpop.permute.xlu0 %144
    %148 = vset.pattern.permute.xlu0 0
    %149 = vperm.xlu0 %148, %v83
    %v150 = vpop.permute.xlu0 %149
    %153 = vset.pattern.permute.xlu0 0
    %154 = vperm.xlu0 %153, %v84
    %v155 = vpop.permute.xlu0 %154
    %158 = vset.pattern.permute.xlu0 0
    %159 = vperm.xlu0 %158, %v85
    %v160 = vpop.permute.xlu0 %159
    %163 = vset.pattern.permute.xlu0 0
    %164 = vperm.xlu0 %163, %v86
    %v165 = vpop.permute.xlu0 %164
    %168 = vset.pattern.permute.xlu0 0
    %169 = vperm.xlu0 %168, %v87
    %v170 = vpop.permute.xlu0 %169
    %173 = vset.pattern.permute.xlu0 0
    %174 = vperm.xlu0 %173, %v88
    %v175 = vpop.permute.xlu0 %174
    %178 = vset.pattern.permute.xlu0 0
    %179 = vperm.xlu0 %178, %v89
    %v180 = vpop.permute.xlu0 %179
    %183 = vset.pattern.permute.xlu0 0
    %184 = vperm.xlu0 %183, %v90
    %v185 = vpop.permute.xlu0 %184
    %188 = vset.pattern.permute.xlu0 0
    %189 = vperm.xlu0 %188, %v91
    %v190 = vpop.permute.xlu0 %189
    %193 = vset.pattern.permute.xlu0 0
    %194 = vperm.xlu0 %193, %v92
    %v195 = vpop.permute.xlu0 %194
    %198 = vset.pattern.permute.xlu0 0
    %199 = vperm.xlu0 %198, %v93
    %v200 = vpop.permute.xlu0 %199
    %203 = vset.pattern.permute.xlu0 0
    %204 = vperm.xlu0 %203, %v94
    %v205 = vpop.permute.xlu0 %204
    %208 = vset.pattern.permute.xlu0 0
    %209 = vperm.xlu0 %208, %v95
    %v210 = vpop.permute.xlu0 %209
    %213 = vset.pattern.permute.xlu0 0
    %214 = vperm.xlu0 %213, %v96
    %v215 = vpop.permute.xlu0 %214
    %218 = vset.pattern.permute.xlu0 0
    %219 = vperm.xlu0 %218, %v97
    %v220 = vpop.permute.xlu0 %219
    %223 = vset.pattern.permute.xlu0 0
    %224 = vperm.xlu0 %223, %v98
    %v225 = vpop.permute.xlu0 %224
    %228 = vset.pattern.permute.xlu0 0
    %229 = vperm.xlu0 %228, %v99
    %v230 = vpop.permute.xlu0 %229
    %233 = vset.pattern.permute.xlu0 0
    %234 = vperm.xlu0 %233, %v100
    %v235 = vpop.permute.xlu0 %234
    %238 = vset.pattern.permute.xlu0 0
    %239 = vperm.xlu0 %238, %v101
    %v240 = vpop.permute.xlu0 %239
    %243 = vset.pattern.permute.xlu0 0
    %244 = vperm.xlu0 %243, %v102
    %v245 = vpop.permute.xlu0 %244
    %248 = vset.pattern.permute.xlu0 0
    %249 = vperm.xlu0 %248, %v103
    %v250 = vpop.permute.xlu0 %249
    %253 = vset.pattern.permute.xlu0 0
    %254 = vperm.xlu0 %253, %v104
    %v255 = vpop.permute.xlu0 %254
    %258 = vset.pattern.permute.xlu0 0
    %259 = vperm.xlu0 %258, %v105
    %v260 = vpop.permute.xlu0 %259
    %263 = vset.pattern.permute.xlu0 0
    %264 = vperm.xlu0 %263, %v106
    %v265 = vpop.permute.xlu0 %264
    %v299 = vunpack.c.l.b16 %v40
    %v300 = vunpack.c.l.b16 %v41
    %v301 = vunpack.c.l.b16 %v42
    %v302 = vunpack.c.l.b16 %v43
    %v303 = vunpack.c.l.b16 %v44
    %v304 = vunpack.c.l.b16 %v45
    %v305 = vunpack.c.l.b16 %v46
    %v306 = vunpack.c.l.b16 %v47
    %v307 = vunpack.c.l.b16 %v48
    %v308 = vunpack.c.l.b16 %v49
    %v309 = vunpack.c.l.b16 %v50
    %v310 = vunpack.c.l.b16 %v51
    %v311 = vunpack.c.l.b16 %v52
    %v312 = vunpack.c.l.b16 %v53
    %v313 = vunpack.c.l.b16 %v54
    %v314 = vunpack.c.l.b16 %v55
    %v315 = vunpack.c.l.b16 %v56
    %v316 = vunpack.c.l.b16 %v57
    %v317 = vunpack.c.l.b16 %v58
    %v318 = vunpack.c.l.b16 %v59
    %v319 = vunpack.c.l.b16 %v60
    %v320 = vunpack.c.l.b16 %v61
    %v321 = vunpack.c.l.b16 %v62
    %v322 = vunpack.c.l.b16 %v63
    %v323 = vunpack.c.l.b16 %v64
    %v324 = vunpack.c.l.b16 %v65
    %v325 = vunpack.c.l.b16 %v66
    %v326 = vunpack.c.l.b16 %v67
    %v327 = vunpack.c.l.b16 %v68
    %v328 = vunpack.c.l.b16 %v69
    %v329 = vunpack.c.l.b16 %v70
    %v330 = vunpack.c.l.b16 %v71
    %v331 = vpack.c.b16 %v300, %v299
    %v332 = vpack.c.b16 %v302, %v301
    %v333 = vpack.c.b16 %v304, %v303
    %v334 = vpack.c.b16 %v306, %v305
    %v335 = vpack.c.b16 %v308, %v307
    %v336 = vpack.c.b16 %v310, %v309
    %v337 = vpack.c.b16 %v312, %v311
    %v338 = vpack.c.b16 %v314, %v313
    %v339 = vpack.c.b16 %v316, %v315
    %v340 = vpack.c.b16 %v318, %v317
    %v341 = vpack.c.b16 %v320, %v319
    %v342 = vpack.c.b16 %v322, %v321
    %v343 = vpack.c.b16 %v324, %v323
    %v344 = vpack.c.b16 %v326, %v325
    %v345 = vpack.c.b16 %v328, %v327
    %v346 = vpack.c.b16 %v330, %v329
    %vm347 = vcmask 130048
    %v349 = vsel %vm347, %v331, 0
    %v352 = vsel %vm347, %v332, 0
    %v355 = vsel %vm347, %v333, 0
    %v358 = vsel %vm347, %v334, 0
    %v361 = vsel %vm347, %v335, 0
    %v364 = vsel %vm347, %v336, 0
    %v367 = vsel %vm347, %v337, 0
    %v370 = vsel %vm347, %v338, 0
    %v373 = vsel %vm347, %v339, 0
    %v376 = vsel %vm347, %v340, 0
    %v379 = vsel %vm347, %v341, 0
    %v382 = vsel %vm347, %v342, 0
    %v385 = vsel %vm347, %v343, 0
    %v388 = vsel %vm347, %v344, 0
    %v391 = vsel %vm347, %v345, 0
    %v394 = vsel %vm347, %v346, 0
    %396 = vmatprep.subr.bf16.mxu0 0
    %397 = vmatpush1.bf16.msra.mxu0 %v74
    %398 = vmatprep.subr.bf16.mxu0 0
    %399 = vmatpush1.bf16.msra.mxu0 0
    %400 = vmatprep.subr.bf16.mxu0 0
    %401 = vmatpush1.bf16.msra.mxu0 0
    %402 = vmatprep.subr.bf16.mxu0 0
    %403 = vmatpush1.bf16.msra.mxu0 0
    %404 = vmatprep.subr.bf16.mxu0 0
    %405 = vmatpush1.bf16.msra.mxu0 0
    %406 = vmatprep.subr.bf16.mxu0 0
    %407 = vmatpush1.bf16.msra.mxu0 0
    %408 = vmatprep.subr.bf16.mxu0 0
    %409 = vmatpush1.bf16.msra.mxu0 0
    %410 = vmatprep.subr.bf16.mxu0 0
    %411 = vmatpush1.bf16.msra.mxu0 0
    %412 = vmatprep.subr.bf16.mxu0 0
    %413 = vmatpush1.bf16.msra.mxu0 0
    %414 = vmatprep.subr.bf16.mxu0 0
    %415 = vmatpush1.bf16.msra.mxu0 0
    %416 = vmatprep.subr.bf16.mxu0 0
    %417 = vmatpush1.bf16.msra.mxu0 0
    %418 = vmatprep.subr.bf16.mxu0 0
    %419 = vmatpush1.bf16.msra.mxu0 0
    %420 = vmatprep.subr.bf16.mxu0 0
    %421 = vmatpush1.bf16.msra.mxu0 0
    %422 = vmatprep.subr.bf16.mxu0 0
    %423 = vmatpush1.bf16.msra.mxu0 0
    %424 = vmatprep.subr.bf16.mxu0 0
    %425 = vmatpush1.bf16.msra.mxu0 0
    %426 = vmatprep.subr.bf16.mxu0 0
    %427 = vmatpush1.bf16.msra.mxu0 0
    %428 = vmatprep.mubr.bf16.mxu0 0
    %429 = vmatmul.mubr.bf16.gmra.mrb[0].mxu0 %v349
    %v430 = vpop.f32.mrb[0].mxu0
    %v431 = vadd.f32 %v110, %v430
    %v432 = vpop.f32.mrb[0].mxu0
    %v433 = vpop.f32.mrb[0].mxu0
    %v434 = vadd.f32 %v115, %v433
    %v435 = vpop.f32.mrb[0].mxu0
    %436 = vmatprep.mubr.bf16.mxu0 0
    %437 = vmatmul.mubr.bf16.gmra.mrb[0].mxu0 %v352
    %v438 = vpop.f32.mrb[0].mxu0
    %v439 = vadd.f32 %v120, %v438
    %v440 = vpop.f32.mrb[0].mxu0
    %v441 = vpop.f32.mrb[0].mxu0
    %v442 = vadd.f32 %v125, %v441
    %v443 = vpop.f32.mrb[0].mxu0
    %444 = vmatprep.mubr.bf16.mxu0 0
    %445 = vmatmul.mubr.bf16.gmra.mrb[0].mxu0 %v355
    %v446 = vpop.f32.mrb[0].mxu0
    %v447 = vadd.f32 %v130, %v446
    %v448 = vpop.f32.mrb[0].mxu0
    %v449 = vpop.f32.mrb[0].mxu0
    %v450 = vadd.f32 %v135, %v449
    %v451 = vpop.f32.mrb[0].mxu0
    %452 = vmatprep.mubr.bf16.mxu0 0
    %453 = vmatmul.mubr.bf16.gmra.mrb[0].mxu0 %v358
    %v454 = vpop.f32.mrb[0].mxu0
    %v455 = vadd.f32 %v140, %v454
    %v456 = vpop.f32.mrb[0].mxu0
    %v457 = vpop.f32.mrb[0].mxu0
    %v458 = vadd.f32 %v145, %v457
    %v459 = vpop.f32.mrb[0].mxu0
    %460 = vmatprep.mubr.bf16.mxu0 0
    %461 = vmatmul.mubr.bf16.gmra.mrb[0].mxu0 %v361
    %v462 = vpop.f32.mrb[0].mxu0
    %v463 = vadd.f32 %v150, %v462
    %v464 = vpop.f32.mrb[0].mxu0
    %v465 = vpop.f32.mrb[0].mxu0
    %v466 = vadd.f32 %v155, %v465
    %v467 = vpop.f32.mrb[0].mxu0
    %468 = vmatprep.mubr.bf16.mxu0 0
    %469 = vmatmul.mubr.bf16.gmra.mrb[0].mxu0 %v364
    %v470 = vpop.f32.mrb[0].mxu0
    %v471 = vadd.f32 %v160, %v470
    %v472 = vpop.f32.mrb[0].mxu0
    %v473 = vpop.f32.mrb[0].mxu0
    %v474 = vadd.f32 %v165, %v473
    %v475 = vpop.f32.mrb[0].mxu0
    %476 = vmatprep.mubr.bf16.mxu0 0
    %477 = vmatmul.mubr.bf16.gmra.mrb[0].mxu0 %v367
    %v478 = vpop.f32.mrb[0].mxu0
    %v479 = vadd.f32 %v170, %v478
    %v480 = vpop.f32.mrb[0].mxu0
    %v481 = vpop.f32.mrb[0].mxu0
    %v482 = vadd.f32 %v175, %v481
    %v483 = vpop.f32.mrb[0].mxu0
    %484 = vmatprep.mubr.bf16.mxu0 0
    %485 = vmatmul.mubr.bf16.gmra.mrb[0].mxu0 %v370
    %v486 = vpop.f32.mrb[0].mxu0
    %v487 = vadd.f32 %v180, %v486
    %v488 = vpop.f32.mrb[0].mxu0
    %v489 = vpop.f32.mrb[0].mxu0
    %v490 = vadd.f32 %v185, %v489
    %v491 = vpop.f32.mrb[0].mxu0
    %492 = vmatprep.mubr.bf16.mxu0 0
    %493 = vmatmul.mubr.bf16.gmra.mrb[0].mxu0 %v373
    %v494 = vpop.f32.mrb[0].mxu0
    %v495 = vadd.f32 %v190, %v494
    %v496 = vpop.f32.mrb[0].mxu0
    %v497 = vpop.f32.mrb[0].mxu0
    %v498 = vadd.f32 %v195, %v497
    %v499 = vpop.f32.mrb[0].mxu0
    %500 = vmatprep.mubr.bf16.mxu0 0
    %501 = vmatmul.mubr.bf16.gmra.mrb[0].mxu0 %v376
    %v502 = vpop.f32.mrb[0].mxu0
    %v503 = vadd.f32 %v200, %v502
    %v504 = vpop.f32.mrb[0].mxu0
    %v505 = vpop.f32.mrb[0].mxu0
    %v506 = vadd.f32 %v205, %v505
    %v507 = vpop.f32.mrb[0].mxu0
    %508 = vmatprep.mubr.bf16.mxu0 0
    %509 = vmatmul.mubr.bf16.gmra.mrb[0].mxu0 %v379
    %v510 = vpop.f32.mrb[0].mxu0
    %v511 = vadd.f32 %v210, %v510
    %v512 = vpop.f32.mrb[0].mxu0
    %v513 = vpop.f32.mrb[0].mxu0
    %v514 = vadd.f32 %v215, %v513
    %v515 = vpop.f32.mrb[0].mxu0
    %516 = vmatprep.mubr.bf16.mxu0 0
    %517 = vmatmul.mubr.bf16.gmra.mrb[0].mxu0 %v382
    %v518 = vpop.f32.mrb[0].mxu0
    %v519 = vadd.f32 %v220, %v518
    %v520 = vpop.f32.mrb[0].mxu0
    %v521 = vpop.f32.mrb[0].mxu0
    %v522 = vadd.f32 %v225, %v521
    %v523 = vpop.f32.mrb[0].mxu0
    %524 = vmatprep.mubr.bf16.mxu0 0
    %525 = vmatmul.mubr.bf16.gmra.mrb[0].mxu0 %v385
    %v526 = vpop.f32.mrb[0].mxu0
    %v527 = vadd.f32 %v230, %v526
    %v528 = vpop.f32.mrb[0].mxu0
    %v529 = vpop.f32.mrb[0].mxu0
    %v530 = vadd.f32 %v235, %v529
    %v531 = vpop.f32.mrb[0].mxu0
    %532 = vmatprep.mubr.bf16.mxu0 0
    %533 = vmatmul.mubr.bf16.gmra.mrb[0].mxu0 %v388
    %v534 = vpop.f32.mrb[0].mxu0
    %v535 = vadd.f32 %v240, %v534
    %v536 = vpop.f32.mrb[0].mxu0
    %v537 = vpop.f32.mrb[0].mxu0
    %v538 = vadd.f32 %v245, %v537
    %v539 = vpop.f32.mrb[0].mxu0
    %540 = vmatprep.mubr.bf16.mxu0 0
    %541 = vmatmul.mubr.bf16.gmra.mrb[0].mxu0 %v391
    %v542 = vpop.f32.mrb[0].mxu0
    %v543 = vadd.f32 %v250, %v542
    %v544 = vpop.f32.mrb[0].mxu0
    %v545 = vpop.f32.mrb[0].mxu0
    %v546 = vadd.f32 %v255, %v545
    %v547 = vpop.f32.mrb[0].mxu0
    %548 = vmatprep.mubr.bf16.mxu0 0
    %549 = vmatmul.mubr.bf16.gmra.mrb[0].mxu0 %v394
    %v550 = vpop.f32.mrb[0].mxu0
    %v551 = vadd.f32 %v260, %v550
    %v552 = vpop.f32.mrb[0].mxu0
    %v553 = vpop.f32.mrb[0].mxu0
    %v554 = vadd.f32 %v265, %v553
    %v555 = vpop.f32.mrb[0].mxu0
    %556 = vdwg.mxu0
    %v557 = vmax.f32 %v431, 0.0
    %v558 = vmax.f32 %v434, 0.0
    %v559 = vmax.f32 %v439, 0.0
    %v560 = vmax.f32 %v442, 0.0
    %v561 = vmax.f32 %v447, 0.0
    %v562 = vmax.f32 %v450, 0.0
    %v563 = vmax.f32 %v455, 0.0
    %v564 = vmax.f32 %v458, 0.0
    %v565 = vmax.f32 %v463, 0.0
    %v566 = vmax.f32 %v466, 0.0
    %v567 = vmax.f32 %v471, 0.0
    %v568 = vmax.f32 %v474, 0.0
    %v569 = vmax.f32 %v479, 0.0
    %v570 = vmax.f32 %v482, 0.0
    %v571 = vmax.f32 %v487, 0.0
    %v572 = vmax.f32 %v490, 0.0
    %v573 = vmax.f32 %v495, 0.0
    %v574 = vmax.f32 %v498, 0.0
    %v575 = vmax.f32 %v503, 0.0
    %v576 = vmax.f32 %v506, 0.0
    %v577 = vmax.f32 %v511, 0.0
    %v578 = vmax.f32 %v514, 0.0
    %v579 = vmax.f32 %v519, 0.0
    %v580 = vmax.f32 %v522, 0.0
    %v581 = vmax.f32 %v527, 0.0
    %v582 = vmax.f32 %v530, 0.0
    %v583 = vmax.f32 %v535, 0.0
    %v584 = vmax.f32 %v538, 0.0
    %v585 = vmax.f32 %v543, 0.0
    %v586 = vmax.f32 %v546, 0.0
    %v587 = vmax.f32 %v551, 0.0
    %v588 = vmax.f32 %v554, 0.0
    %v589 = vld [vmem:[%s3] sm:$0xff]
    %v590 = vld [vmem:[%s3 + $0x8] sm:$0xff]
    %v591 = vld [vmem:[%s3 + $0x10] sm:$0xff]
    %v592 = vld [vmem:[%s3 + $0x18] sm:$0xff]
    %v593 = vld [vmem:[%s3 + $0x20] sm:$0xff]
    %v594 = vld [vmem:[%s3 + $0x28] sm:$0xff]
    %v595 = vld [vmem:[%s3 + $0x30] sm:$0xff]
    %v596 = vld [vmem:[%s3 + $0x38] sm:$0xff]
    %v597 = vld [vmem:[%s3 + $0x40] sm:$0xff]
    %v598 = vld [vmem:[%s3 + $0x48] sm:$0xff]
    %v599 = vld [vmem:[%s3 + $0x50] sm:$0xff]
    %v600 = vld [vmem:[%s3 + $0x58] sm:$0xff]
    %v601 = vld [vmem:[%s3 + $0x60] sm:$0xff]
    %v602 = vld [vmem:[%s3 + $0x68] sm:$0xff]
    %v603 = vld [vmem:[%s3 + $0x70] sm:$0xff]
    %v604 = vld [vmem:[%s3 + $0x78] sm:$0xff]
    %v605 = vld [vmem:[%s3 + $0x80] sm:$0xff]
    %v606 = vld [vmem:[%s3 + $0x88] sm:$0xff]
    %v607 = vld [vmem:[%s3 + $0x90] sm:$0xff]
    %v608 = vld [vmem:[%s3 + $0x98] sm:$0xff]
    %v609 = vld [vmem:[%s3 + $0xa0] sm:$0xff]
    %v610 = vld [vmem:[%s3 + $0xa8] sm:$0xff]
    %v611 = vld [vmem:[%s3 + $0xb0] sm:$0xff]
    %v612 = vld [vmem:[%s3 + $0xb8] sm:$0xff]
    %v613 = vld [vmem:[%s3 + $0xc0] sm:$0xff]
    %v614 = vld [vmem:[%s3 + $0xc8] sm:$0xff]
    %v615 = vld [vmem:[%s3 + $0xd0] sm:$0xff]
    %v616 = vld [vmem:[%s3 + $0xd8] sm:$0xff]
    %v617 = vld [vmem:[%s3 + $0xe0] sm:$0xff]
    %v618 = vld [vmem:[%s3 + $0xe8] sm:$0xff]
    %v619 = vld [vmem:[%s3 + $0xf0] sm:$0xff]
    %v620 = vld [vmem:[%s3 + $0xf8] sm:$0xff]
    %v621 = vpack.c.bf16 %v558, %v557
    %v622 = vpack.c.bf16 %v560, %v559
    %v623 = vpack.c.bf16 %v562, %v561
    %v624 = vpack.c.bf16 %v564, %v563
    %v625 = vpack.c.bf16 %v566, %v565
    %v626 = vpack.c.bf16 %v568, %v567
    %v627 = vpack.c.bf16 %v570, %v569
    %v628 = vpack.c.bf16 %v572, %v571
    %v629 = vpack.c.bf16 %v574, %v573
    %v630 = vpack.c.bf16 %v576, %v575
    %v631 = vpack.c.bf16 %v578, %v577
    %v632 = vpack.c.bf16 %v580, %v579
    %v633 = vpack.c.bf16 %v582, %v581
    %v634 = vpack.c.bf16 %v584, %v583
    %v635 = vpack.c.bf16 %v586, %v585
    %v636 = vpack.c.bf16 %v588, %v587
    %v637 = vld [vmem:[%s4] sm:$0xff]
    %v638 = vld [vmem:[%s4 + $0x8] sm:$0xff]
    %v639 = vld [vmem:[%s4 + $0x10] sm:$0xff]
    %v640 = vld [vmem:[%s4 + $0x18] sm:$0xff]
    %v641 = vld [vmem:[%s4 + $0x20] sm:$0xff]
    %v642 = vld [vmem:[%s4 + $0x28] sm:$0xff]
    %v643 = vld [vmem:[%s4 + $0x30] sm:$0xff]
    %v644 = vld [vmem:[%s4 + $0x38] sm:$0xff]
    %v645 = vld [vmem:[%s4 + $0x40] sm:$0xff]
    %v646 = vld [vmem:[%s4 + $0x48] sm:$0xff]
    %v647 = vld [vmem:[%s4 + $0x50] sm:$0xff]
    %v648 = vld [vmem:[%s4 + $0x58] sm:$0xff]
    %v649 = vld [vmem:[%s4 + $0x60] sm:$0xff]
    %v650 = vld [vmem:[%s4 + $0x68] sm:$0xff]
    %v651 = vld [vmem:[%s4 + $0x70] sm:$0xff]
    %v652 = vld [vmem:[%s4 + $0x78] sm:$0xff]
    %v653 = vld [vmem:[%s4 + $0x80] sm:$0xff]
    %v654 = vld [vmem:[%s4 + $0x88] sm:$0xff]
    %v655 = vld [vmem:[%s4 + $0x90] sm:$0xff]
    %v656 = vld [vmem:[%s4 + $0x98] sm:$0xff]
    %v657 = vld [vmem:[%s4 + $0xa0] sm:$0xff]
    %v658 = vld [vmem:[%s4 + $0xa8] sm:$0xff]
    %v659 = vld [vmem:[%s4 + $0xb0] sm:$0xff]
    %v660 = vld [vmem:[%s4 + $0xb8] sm:$0xff]
    %v661 = vld [vmem:[%s4 + $0xc0] sm:$0xff]
    %v662 = vld [vmem:[%s4 + $0xc8] sm:$0xff]
    %v663 = vld [vmem:[%s4 + $0xd0] sm:$0xff]
    %v664 = vld [vmem:[%s4 + $0xd8] sm:$0xff]
    %v665 = vld [vmem:[%s4 + $0xe0] sm:$0xff]
    %v666 = vld [vmem:[%s4 + $0xe8] sm:$0xff]
    %v667 = vld [vmem:[%s4 + $0xf0] sm:$0xff]
    %v668 = vld [vmem:[%s4 + $0xf8] sm:$0xff]
    %670 = vset.pattern.permute.xlu0 0
    %671 = vperm.xlu0 %670, %v637
    %v672 = vpop.permute.xlu0 %671
    %675 = vset.pattern.permute.xlu0 0
    %676 = vperm.xlu0 %675, %v638
    %v677 = vpop.permute.xlu0 %676
    %680 = vset.pattern.permute.xlu0 0
    %681 = vperm.xlu0 %680, %v639
    %v682 = vpop.permute.xlu0 %681
    %685 = vset.pattern.permute.xlu0 0
    %686 = vperm.xlu0 %685, %v640
    %v687 = vpop.permute.xlu0 %686
    %690 = vset.pattern.permute.xlu0 0
    %691 = vperm.xlu0 %690, %v641
    %v692 = vpop.permute.xlu0 %691
    %695 = vset.pattern.permute.xlu0 0
    %696 = vperm.xlu0 %695, %v642
    %v697 = vpop.permute.xlu0 %696
    %700 = vset.pattern.permute.xlu0 0
    %701 = vperm.xlu0 %700, %v643
    %v702 = vpop.permute.xlu0 %701
    %705 = vset.pattern.permute.xlu0 0
    %706 = vperm.xlu0 %705, %v644
    %v707 = vpop.permute.xlu0 %706
    %710 = vset.pattern.permute.xlu0 0
    %711 = vperm.xlu0 %710, %v645
    %v712 = vpop.permute.xlu0 %711
    %715 = vset.pattern.permute.xlu0 0
    %716 = vperm.xlu0 %715, %v646
    %v717 = vpop.permute.xlu0 %716
    %720 = vset.pattern.permute.xlu0 0
    %721 = vperm.xlu0 %720, %v647
    %v722 = vpop.permute.xlu0 %721
    %725 = vset.pattern.permute.xlu0 0
    %726 = vperm.xlu0 %725, %v648
    %v727 = vpop.permute.xlu0 %726
    %730 = vset.pattern.permute.xlu0 0
    %731 = vperm.xlu0 %730, %v649
    %v732 = vpop.permute.xlu0 %731
    %735 = vset.pattern.permute.xlu0 0
    %736 = vperm.xlu0 %735, %v650
    %v737 = vpop.permute.xlu0 %736
    %740 = vset.pattern.permute.xlu0 0
    %741 = vperm.xlu0 %740, %v651
    %v742 = vpop.permute.xlu0 %741
    %745 = vset.pattern.permute.xlu0 0
    %746 = vperm.xlu0 %745, %v652
    %v747 = vpop.permute.xlu0 %746
    %750 = vset.pattern.permute.xlu0 0
    %751 = vperm.xlu0 %750, %v653
    %v752 = vpop.permute.xlu0 %751
    %755 = vset.pattern.permute.xlu0 0
    %756 = vperm.xlu0 %755, %v654
    %v757 = vpop.permute.xlu0 %756
    %760 = vset.pattern.permute.xlu0 0
    %761 = vperm.xlu0 %760, %v655
    %v762 = vpop.permute.xlu0 %761
    %765 = vset.pattern.permute.xlu0 0
    %766 = vperm.xlu0 %765, %v656
    %v767 = vpop.permute.xlu0 %766
    %770 = vset.pattern.permute.xlu0 0
    %771 = vperm.xlu0 %770, %v657
    %v772 = vpop.permute.xlu0 %771
    %775 = vset.pattern.permute.xlu0 0
    %776 = vperm.xlu0 %775, %v658
    %v777 = vpop.permute.xlu0 %776
    %780 = vset.pattern.permute.xlu0 0
    %781 = vperm.xlu0 %780, %v659
    %v782 = vpop.permute.xlu0 %781
    %785 = vset.pattern.permute.xlu0 0
    %786 = vperm.xlu0 %785, %v660
    %v787 = vpop.permute.xlu0 %786
    %790 = vset.pattern.permute.xlu0 0
    %791 = vperm.xlu0 %790, %v661
    %v792 = vpop.permute.xlu0 %791
    %795 = vset.pattern.permute.xlu0 0
    %796 = vperm.xlu0 %795, %v662
    %v797 = vpop.permute.xlu0 %796
    %800 = vset.pattern.permute.xlu0 0
    %801 = vperm.xlu0 %800, %v663
    %v802 = vpop.permute.xlu0 %801
    %805 = vset.pattern.permute.xlu0 0
    %806 = vperm.xlu0 %805, %v664
    %v807 = vpop.permute.xlu0 %806
    %810 = vset.pattern.permute.xlu0 0
    %811 = vperm.xlu0 %810, %v665
    %v812 = vpop.permute.xlu0 %811
    %815 = vset.pattern.permute.xlu0 0
    %816 = vperm.xlu0 %815, %v666
    %v817 = vpop.permute.xlu0 %816
    %820 = vset.pattern.permute.xlu0 0
    %821 = vperm.xlu0 %820, %v667
    %v822 = vpop.permute.xlu0 %821
    %825 = vset.pattern.permute.xlu0 0
    %826 = vperm.xlu0 %825, %v668
    %v827 = vpop.permute.xlu0 %826
    %v861 = vunpack.c.l.b16 %v589
    %v862 = vunpack.c.h.b16 %v589
    %v863 = vunpack.c.l.b16 %v590
    %v864 = vunpack.c.h.b16 %v590
    %v865 = vunpack.c.l.b16 %v591
    %v866 = vunpack.c.h.b16 %v591
    %v867 = vunpack.c.l.b16 %v592
    %v868 = vunpack.c.h.b16 %v592
    %v869 = vunpack.c.l.b16 %v593
    %v870 = vunpack.c.h.b16 %v593
    %v871 = vunpack.c.l.b16 %v594
    %v872 = vunpack.c.h.b16 %v594
    %v873 = vunpack.c.l.b16 %v595
    %v874 = vunpack.c.h.b16 %v595
    %v875 = vunpack.c.l.b16 %v596
    %v876 = vunpack.c.h.b16 %v596
    %v877 = vunpack.c.l.b16 %v597
    %v878 = vunpack.c.h.b16 %v597
    %v879 = vunpack.c.l.b16 %v598
    %v880 = vunpack.c.h.b16 %v598
    %v881 = vunpack.c.l.b16 %v599
    %v882 = vunpack.c.h.b16 %v599
    %v883 = vunpack.c.l.b16 %v600
    %v884 = vunpack.c.h.b16 %v600
    %v885 = vunpack.c.l.b16 %v601
    %v886 = vunpack.c.h.b16 %v601
    %v887 = vunpack.c.l.b16 %v602
    %v888 = vunpack.c.h.b16 %v602
    %v889 = vunpack.c.l.b16 %v603
    %v890 = vunpack.c.h.b16 %v603
    %v891 = vunpack.c.l.b16 %v604
    %v892 = vunpack.c.h.b16 %v604
    %v893 = vunpack.c.l.b16 %v605
    %v894 = vunpack.c.h.b16 %v605
    %v895 = vunpack.c.l.b16 %v606
    %v896 = vunpack.c.h.b16 %v606
    %v897 = vunpack.c.l.b16 %v607
    %v898 = vunpack.c.h.b16 %v607
    %v899 = vunpack.c.l.b16 %v608
    %v900 = vunpack.c.h.b16 %v608
    %v901 = vunpack.c.l.b16 %v609
    %v902 = vunpack.c.h.b16 %v609
    %v903 = vunpack.c.l.b16 %v610
    %v904 = vunpack.c.h.b16 %v610
    %v905 = vunpack.c.l.b16 %v611
    %v906 = vunpack.c.h.b16 %v611
    %v907 = vunpack.c.l.b16 %v612
    %v908 = vunpack.c.h.b16 %v612
    %v909 = vunpack.c.l.b16 %v613
    %v910 = vunpack.c.h.b16 %v613
    %v911 = vunpack.c.l.b16 %v614
    %v912 = vunpack.c.h.b16 %v614
    %v913 = vunpack.c.l.b16 %v615
    %v914 = vunpack.c.h.b16 %v615
    %v915 = vunpack.c.l.b16 %v616
    %v916 = vunpack.c.h.b16 %v616
    %v917 = vunpack.c.l.b16 %v617
    %v918 = vunpack.c.h.b16 %v617
    %v919 = vunpack.c.l.b16 %v618
    %v920 = vunpack.c.h.b16 %v618
    %v921 = vunpack.c.l.b16 %v619
    %v922 = vunpack.c.h.b16 %v619
    %v923 = vunpack.c.l.b16 %v620
    %v924 = vunpack.c.h.b16 %v620
    %v925 = vpack.c.b16 %v863, %v861
    %v926 = vpack.c.b16 %v864, %v862
    %v927 = vpack.c.b16 %v867, %v865
    %v928 = vpack.c.b16 %v868, %v866
    %v929 = vpack.c.b16 %v871, %v869
    %v930 = vpack.c.b16 %v872, %v870
    %v931 = vpack.c.b16 %v875, %v873
    %v932 = vpack.c.b16 %v876, %v874
    %v933 = vpack.c.b16 %v879, %v877
    %v934 = vpack.c.b16 %v880, %v878
    %v935 = vpack.c.b16 %v883, %v881
    %v936 = vpack.c.b16 %v884, %v882
    %v937 = vpack.c.b16 %v887, %v885
    %v938 = vpack.c.b16 %v888, %v886
    %v939 = vpack.c.b16 %v891, %v889
    %v940 = vpack.c.b16 %v892, %v890
    %v941 = vpack.c.b16 %v895, %v893
    %v942 = vpack.c.b16 %v896, %v894
    %v943 = vpack.c.b16 %v899, %v897
    %v944 = vpack.c.b16 %v900, %v898
    %v945 = vpack.c.b16 %v903, %v901
    %v946 = vpack.c.b16 %v904, %v902
    %v947 = vpack.c.b16 %v907, %v905
    %v948 = vpack.c.b16 %v908, %v906
    %v949 = vpack.c.b16 %v911, %v909
    %v950 = vpack.c.b16 %v912, %v910
    %v951 = vpack.c.b16 %v915, %v913
    %v952 = vpack.c.b16 %v916, %v914
    %v953 = vpack.c.b16 %v919, %v917
    %v954 = vpack.c.b16 %v920, %v918
    %v955 = vpack.c.b16 %v923, %v921
    %v956 = vpack.c.b16 %v924, %v922
    %989 = vmatprep.subr.bf16.mxu0 0
    %990 = vmatpush1.bf16.msra.mxu0 %v621
    %991 = vmatprep.subr.bf16.mxu0 0
    %992 = vmatpush1.bf16.msra.mxu0 %v622
    %993 = vmatprep.subr.bf16.mxu0 0
    %994 = vmatpush1.bf16.msra.mxu0 %v623
    %995 = vmatprep.subr.bf16.mxu0 0
    %996 = vmatpush1.bf16.msra.mxu0 %v624
    %997 = vmatprep.subr.bf16.mxu0 0
    %998 = vmatpush1.bf16.msra.mxu0 %v625
    %999 = vmatprep.subr.bf16.mxu0 0
    %1000 = vmatpush1.bf16.msra.mxu0 %v626
    %1001 = vmatprep.subr.bf16.mxu0 0
    %1002 = vmatpush1.bf16.msra.mxu0 %v627
    %1003 = vmatprep.subr.bf16.mxu0 0
    %1004 = vmatpush1.bf16.msra.mxu0 %v628
    %1005 = vmatprep.subr.bf16.mxu0 0
    %1006 = vmatpush1.bf16.msra.mxu0 %v629
    %1007 = vmatprep.subr.bf16.mxu0 0
    %1008 = vmatpush1.bf16.msra.mxu0 %v630
    %1009 = vmatprep.subr.bf16.mxu0 0
    %1010 = vmatpush1.bf16.msra.mxu0 %v631
    %1011 = vmatprep.subr.bf16.mxu0 0
    %1012 = vmatpush1.bf16.msra.mxu0 %v632
    %1013 = vmatprep.subr.bf16.mxu0 0
    %1014 = vmatpush1.bf16.msra.mxu0 %v633
    %1015 = vmatprep.subr.bf16.mxu0 0
    %1016 = vmatpush1.bf16.msra.mxu0 %v634
    %1017 = vmatprep.subr.bf16.mxu0 0
    %1018 = vmatpush1.bf16.msra.mxu0 %v635
    %1019 = vmatprep.subr.bf16.mxu0 0
    %1020 = vmatpush1.bf16.msra.mxu0 %v636
    %1021 = vmatprep.mubr.bf16.mxu0 %v926
    %1022 = vmatmul.mubr.bf16.gmra.mrb[0].mxu0 %v925
    %v1023 = vpop.f32.mrb[0].mxu0
    %v1024 = vadd.f32 %v672, %v1023
    %v1025 = vpop.f32.mrb[0].mxu0
    %v1026 = vpop.f32.mrb[0].mxu0
    %v1027 = vadd.f32 %v677, %v1026
    %v1028 = vpop.f32.mrb[0].mxu0
    %1029 = vmatprep.mubr.bf16.mxu0 %v928
    %1030 = vmatmul.mubr.bf16.gmra.mrb[0].mxu0 %v927
    %v1031 = vpop.f32.mrb[0].mxu0
    %v1032 = vadd.f32 %v682, %v1031
    %v1033 = vpop.f32.mrb[0].mxu0
    %v1034 = vpop.f32.mrb[0].mxu0
    %v1035 = vadd.f32 %v687, %v1034
    %v1036 = vpop.f32.mrb[0].mxu0
    %1037 = vmatprep.mubr.bf16.mxu0 %v930
    %1038 = vmatmul.mubr.bf16.gmra.mrb[0].mxu0 %v929
    %v1039 = vpop.f32.mrb[0].mxu0
    %v1040 = vadd.f32 %v692, %v1039
    %v1041 = vpop.f32.mrb[0].mxu0
    %v1042 = vpop.f32.mrb[0].mxu0
    %v1043 = vadd.f32 %v697, %v1042
    %v1044 = vpop.f32.mrb[0].mxu0
    %1045 = vmatprep.mubr.bf16.mxu0 %v932
    %1046 = vmatmul.mubr.bf16.gmra.mrb[0].mxu0 %v931
    %v1047 = vpop.f32.mrb[0].mxu0
    %v1048 = vadd.f32 %v702, %v1047
    %v1049 = vpop.f32.mrb[0].mxu0
    %v1050 = vpop.f32.mrb[0].mxu0
    %v1051 = vadd.f32 %v707, %v1050
    %v1052 = vpop.f32.mrb[0].mxu0
    %1053 = vmatprep.mubr.bf16.mxu0 %v934
    %1054 = vmatmul.mubr.bf16.gmra.mrb[0].mxu0 %v933
    %v1055 = vpop.f32.mrb[0].mxu0
    %v1056 = vadd.f32 %v712, %v1055
    %v1057 = vpop.f32.mrb[0].mxu0
    %v1058 = vpop.f32.mrb[0].mxu0
    %v1059 = vadd.f32 %v717, %v1058
    %v1060 = vpop.f32.mrb[0].mxu0
    %1061 = vmatprep.mubr.bf16.mxu0 %v936
    %1062 = vmatmul.mubr.bf16.gmra.mrb[0].mxu0 %v935
    %v1063 = vpop.f32.mrb[0].mxu0
    %v1064 = vadd.f32 %v722, %v1063
    %v1065 = vpop.f32.mrb[0].mxu0
    %v1066 = vpop.f32.mrb[0].mxu0
    %v1067 = vadd.f32 %v727, %v1066
    %v1068 = vpop.f32.mrb[0].mxu0
    %1069 = vmatprep.mubr.bf16.mxu0 %v938
    %1070 = vmatmul.mubr.bf16.gmra.mrb[0].mxu0 %v937
    %v1071 = vpop.f32.mrb[0].mxu0
    %v1072 = vadd.f32 %v732, %v1071
    %v1073 = vpop.f32.mrb[0].mxu0
    %v1074 = vpop.f32.mrb[0].mxu0
    %v1075 = vadd.f32 %v737, %v1074
    %v1076 = vpop.f32.mrb[0].mxu0
    %1077 = vmatprep.mubr.bf16.mxu0 %v940
    %1078 = vmatmul.mubr.bf16.gmra.mrb[0].mxu0 %v939
    %v1079 = vpop.f32.mrb[0].mxu0
    %v1080 = vadd.f32 %v742, %v1079
    %v1081 = vpop.f32.mrb[0].mxu0
    %v1082 = vpop.f32.mrb[0].mxu0
    %v1083 = vadd.f32 %v747, %v1082
    %v1084 = vpop.f32.mrb[0].mxu0
    %1085 = vmatprep.mubr.bf16.mxu0 %v942
    %1086 = vmatmul.mubr.bf16.gmra.mrb[0].mxu0 %v941
    %v1087 = vpop.f32.mrb[0].mxu0
    %v1088 = vadd.f32 %v752, %v1087
    %v1089 = vpop.f32.mrb[0].mxu0
    %v1090 = vpop.f32.mrb[0].mxu0
    %v1091 = vadd.f32 %v757, %v1090
    %v1092 = vpop.f32.mrb[0].mxu0
    %1093 = vmatprep.mubr.bf16.mxu0 %v944
    %1094 = vmatmul.mubr.bf16.gmra.mrb[0].mxu0 %v943
    %v1095 = vpop.f32.mrb[0].mxu0
    %v1096 = vadd.f32 %v762, %v1095
    %v1097 = vpop.f32.mrb[0].mxu0
    %v1098 = vpop.f32.mrb[0].mxu0
    %v1099 = vadd.f32 %v767, %v1098
    %v1100 = vpop.f32.mrb[0].mxu0
    %1101 = vmatprep.mubr.bf16.mxu0 %v946
    %1102 = vmatmul.mubr.bf16.gmra.mrb[0].mxu0 %v945
    %v1103 = vpop.f32.mrb[0].mxu0
    %v1104 = vadd.f32 %v772, %v1103
    %v1105 = vpop.f32.mrb[0].mxu0
    %v1106 = vpop.f32.mrb[0].mxu0
    %v1107 = vadd.f32 %v777, %v1106
    %v1108 = vpop.f32.mrb[0].mxu0
    %1109 = vmatprep.mubr.bf16.mxu0 %v948
    %1110 = vmatmul.mubr.bf16.gmra.mrb[0].mxu0 %v947
    %v1111 = vpop.f32.mrb[0].mxu0
    %v1112 = vadd.f32 %v782, %v1111
    %v1113 = vpop.f32.mrb[0].mxu0
    %v1114 = vpop.f32.mrb[0].mxu0
    %v1115 = vadd.f32 %v787, %v1114
    %v1116 = vpop.f32.mrb[0].mxu0
    %1117 = vmatprep.mubr.bf16.mxu0 %v950
    %1118 = vmatmul.mubr.bf16.gmra.mrb[0].mxu0 %v949
    %v1119 = vpop.f32.mrb[0].mxu0
    %v1120 = vadd.f32 %v792, %v1119
    %v1121 = vpop.f32.mrb[0].mxu0
    %v1122 = vpop.f32.mrb[0].mxu0
    %v1123 = vadd.f32 %v797, %v1122
    %v1124 = vpop.f32.mrb[0].mxu0
    %1125 = vmatprep.mubr.bf16.mxu0 %v952
    %1126 = vmatmul.mubr.bf16.gmra.mrb[0].mxu0 %v951
    %v1127 = vpop.f32.mrb[0].mxu0
    %v1128 = vadd.f32 %v802, %v1127
    %v1129 = vpop.f32.mrb[0].mxu0
    %v1130 = vpop.f32.mrb[0].mxu0
    %v1131 = vadd.f32 %v807, %v1130
    %v1132 = vpop.f32.mrb[0].mxu0
    %1133 = vmatprep.mubr.bf16.mxu0 %v954
    %1134 = vmatmul.mubr.bf16.gmra.mrb[0].mxu0 %v953
    %v1135 = vpop.f32.mrb[0].mxu0
    %v1136 = vadd.f32 %v812, %v1135
    %v1137 = vpop.f32.mrb[0].mxu0
    %v1138 = vpop.f32.mrb[0].mxu0
    %v1139 = vadd.f32 %v817, %v1138
    %v1140 = vpop.f32.mrb[0].mxu0
    %1141 = vmatprep.mubr.bf16.mxu0 %v956
    %1142 = vmatmul.mubr.bf16.gmra.mrb[0].mxu0 %v955
    %v1143 = vpop.f32.mrb[0].mxu0
    %v1144 = vadd.f32 %v822, %v1143
    %v1145 = vpop.f32.mrb[0].mxu0
    %v1146 = vpop.f32.mrb[0].mxu0
    %v1147 = vadd.f32 %v827, %v1146
    %v1148 = vpop.f32.mrb[0].mxu0
    %1149 = vdwg.mxu0
    %v1150 = vmax.f32 %v1024, 0.0
    %v1151 = vmax.f32 %v1027, 0.0
    %v1152 = vmax.f32 %v1032, 0.0
    %v1153 = vmax.f32 %v1035, 0.0
    %v1154 = vmax.f32 %v1040, 0.0
    %v1155 = vmax.f32 %v1043, 0.0
    %v1156 = vmax.f32 %v1048, 0.0
    %v1157 = vmax.f32 %v1051, 0.0
    %v1158 = vmax.f32 %v1056, 0.0
    %v1159 = vmax.f32 %v1059, 0.0
    %v1160 = vmax.f32 %v1064, 0.0
    %v1161 = vmax.f32 %v1067, 0.0
    %v1162 = vmax.f32 %v1072, 0.0
    %v1163 = vmax.f32 %v1075, 0.0
    %v1164 = vmax.f32 %v1080, 0.0
    %v1165 = vmax.f32 %v1083, 0.0
    %v1166 = vmax.f32 %v1088, 0.0
    %v1167 = vmax.f32 %v1091, 0.0
    %v1168 = vmax.f32 %v1096, 0.0
    %v1169 = vmax.f32 %v1099, 0.0
    %v1170 = vmax.f32 %v1104, 0.0
    %v1171 = vmax.f32 %v1107, 0.0
    %v1172 = vmax.f32 %v1112, 0.0
    %v1173 = vmax.f32 %v1115, 0.0
    %v1174 = vmax.f32 %v1120, 0.0
    %v1175 = vmax.f32 %v1123, 0.0
    %v1176 = vmax.f32 %v1128, 0.0
    %v1177 = vmax.f32 %v1131, 0.0
    %v1178 = vmax.f32 %v1136, 0.0
    %v1179 = vmax.f32 %v1139, 0.0
    %v1180 = vmax.f32 %v1144, 0.0
    %v1181 = vmax.f32 %v1147, 0.0
    %v1182 = vld [vmem:[%s5] sm:$0xff]
    %v1183 = vld [vmem:[%s5 + $0x8] sm:$0xff]
    %v1184 = vpack.c.bf16 %v1151, %v1150
    %v1185 = vpack.c.bf16 %v1153, %v1152
    %v1186 = vpack.c.bf16 %v1155, %v1154
    %v1187 = vpack.c.bf16 %v1157, %v1156
    %v1188 = vpack.c.bf16 %v1159, %v1158
    %v1189 = vpack.c.bf16 %v1161, %v1160
    %v1190 = vpack.c.bf16 %v1163, %v1162
    %v1191 = vpack.c.bf16 %v1165, %v1164
    %v1192 = vpack.c.bf16 %v1167, %v1166
    %v1193 = vpack.c.bf16 %v1169, %v1168
    %v1194 = vpack.c.bf16 %v1171, %v1170
    %v1195 = vpack.c.bf16 %v1173, %v1172
    %v1196 = vpack.c.bf16 %v1175, %v1174
    %v1197 = vpack.c.bf16 %v1177, %v1176
    %v1198 = vpack.c.bf16 %v1179, %v1178
    %v1199 = vpack.c.bf16 %v1181, %v1180
    %v1200 = vld [vmem:[%s6] sm:$0xff]
    %v1201 = vld [vmem:[%s6 + $0x8] sm:$0xff]
    %1203 = vset.pattern.permute.xlu0 0
    %1204 = vperm.xlu0 %1203, %v1200
    %v1205 = vpop.permute.xlu0 %1204
    %1208 = vset.pattern.permute.xlu0 0
    %1209 = vperm.xlu0 %1208, %v1201
    %v1210 = vpop.permute.xlu0 %1209
    %v1214 = vunpack.c.l.b16 %v1182
    %v1215 = vunpack.c.h.b16 %v1182
    %v1216 = vunpack.c.l.b16 %v1183
    %v1217 = vunpack.c.h.b16 %v1183
    %v1218 = vpack.c.b16 %v1216, %v1214
    %v1219 = vpack.c.b16 %v1217, %v1215
    %1222 = vmatprep.subr.bf16.mxu0 0
    %1223 = vmatpush1.bf16.msra.mxu0 %v1184
    %1224 = vmatprep.subr.bf16.mxu0 0
    %1225 = vmatpush1.bf16.msra.mxu0 %v1185
    %1226 = vmatprep.subr.bf16.mxu0 0
    %1227 = vmatpush1.bf16.msra.mxu0 %v1186
    %1228 = vmatprep.subr.bf16.mxu0 0
    %1229 = vmatpush1.bf16.msra.mxu0 %v1187
    %1230 = vmatprep.subr.bf16.mxu0 0
    %1231 = vmatpush1.bf16.msra.mxu0 %v1188
    %1232 = vmatprep.subr.bf16.mxu0 0
    %1233 = vmatpush1.bf16.msra.mxu0 %v1189
    %1234 = vmatprep.subr.bf16.mxu0 0
    %1235 = vmatpush1.bf16.msra.mxu0 %v1190
    %1236 = vmatprep.subr.bf16.mxu0 0
    %1237 = vmatpush1.bf16.msra.mxu0 %v1191
    %1238 = vmatprep.subr.bf16.mxu0 0
    %1239 = vmatpush1.bf16.msra.mxu0 %v1192
    %1240 = vmatprep.subr.bf16.mxu0 0
    %1241 = vmatpush1.bf16.msra.mxu0 %v1193
    %1242 = vmatprep.subr.bf16.mxu0 0
    %1243 = vmatpush1.bf16.msra.mxu0 %v1194
    %1244 = vmatprep.subr.bf16.mxu0 0
    %1245 = vmatpush1.bf16.msra.mxu0 %v1195
    %1246 = vmatprep.subr.bf16.mxu0 0
    %1247 = vmatpush1.bf16.msra.mxu0 %v1196
    %1248 = vmatprep.subr.bf16.mxu0 0
    %1249 = vmatpush1.bf16.msra.mxu0 %v1197
    %1250 = vmatprep.subr.bf16.mxu0 0
    %1251 = vmatpush1.bf16.msra.mxu0 %v1198
    %1252 = vmatprep.subr.bf16.mxu0 0
    %1253 = vmatpush1.bf16.msra.mxu0 %v1199
    %1254 = vmatprep.mubr.bf16.mxu0 %v1219
    %1255 = vmatmul.mubr.bf16.gmra.mrb[0].mxu0 %v1218
    %v1256 = vpop.f32.mrb[0].mxu0
    %v1257 = vadd.f32 %v1205, %v1256
    %v1258 = vpop.f32.mrb[0].mxu0
    %v1259 = vpop.f32.mrb[0].mxu0
    %v1260 = vadd.f32 %v1210, %v1259
    %v1261 = vpop.f32.mrb[0].mxu0
    %1262 = vdwg.mxu0
    %v1263 = vmax.f32 %v1260, -5.0
    %v1264 = vmin.f32 %v1263, 2.0
    %v1265 = vmul.f32 %v1264, 1.442695
    %v1266 = vpow.pop %v1265
    %v1267 = vld [vmem:[%s9] sm:$0xff]
    %v1268 = vmul.f32 %v1266, %v1267
    %v1269 = vadd.f32 %v1257, %v1268
    %v1270 = vtanh.pop %v1269
    %v1271 = vld [vmem:[%s7] sm:$0xff]
    %1273 = vset.pattern.permute.xlu0 0
    %1274 = vperm.xlu0 %1273, %v1271
    %v1275 = vpop.permute.xlu0 %1274
    %v1277 = vmul.f32 %v1270, %v1275
    %v1278 = vld [vmem:[%s8] sm:$0xff]
    %1280 = vset.pattern.permute.xlu0 0
    %1281 = vperm.xlu0 %1280, %v1278
    %v1282 = vpop.permute.xlu0 %1281
    %v1284 = vadd.f32 %v1277, %v1282
    %1285 = vst.msk [vmem:[#allocation2] sm:$0xff] %vm347, %v1284
    %v1286 = vmul.f32 %v1267, -0.5
    %v1287 = vmul.f32 %v1286, %v1267
    %v1288 = vsub.f32 %v1287, %v1264
    %v1289 = vsub.f32 %v1288, 0.9189385
    %v1290 = vmul.f32 %v1270, %v1270
    %v1291 = vsub.f32 1.0, %v1290
    %v1292 = vmul.f32 %v1275, %v1291
    %v1293 = vadd.f32 %v1292, 1e-06
    %v1294 = vlog2.pop %v1293
    %v1295 = vmul.f32 %v1294, 0.6931472
    %v1296 = vsub.f32 %v1289, %v1295
    %v1297 = vsel %vm347, %v1296, 0.0
    %v1298 = vrot.slane %v1297, 4
    %v1299 = vadd.f32 %v1297, %v1298
    %v1300 = vrot.slane %v1299, 2
    %v1301 = vadd.f32 %v1299, %v1300
    %v1302 = vrot.slane %v1301, 1
    %v1303 = vadd.f32 %v1301, %v1302
    %vm1304 = vcmask 122880
    %1305 = vst.msk [vmem:[#allocation4] sm:$0x1] %vm1304, %v1303
    // Predicated region
    $region42: #{sac_actor_forward.1} parent=1 // pred_check
      _
    $region43: #{sac_actor_forward.1} parent=1 // pred_check_branch
      %1307 = sbr.rel (0) target = $region45
    $region44: #{sac_actor_forward.1} parent=1 // pred_region
      %s1309 = ssub.s32 128, 128
      %1310 = vsyncadd [#allocation3], %s1309
      %s1312 = sshll.u32 [#allocation2], 4
      %s1313 = int_to_ptr.vmem [resolvable:$true] %s1312
      %1315 = dma.vmem_to_hbm [thread:$0]  %s1313, 128, %s10, [#allocation3]
    $region45: #{sac_actor_forward.1} parent=1 // pred_fallthru
      _
    // Predicated region
    $region46: #{sac_actor_forward.1} parent=1 // pred_check
      _
    $region47: #{sac_actor_forward.1} parent=1 // pred_check_branch
      %1317 = sbr.rel (0) target = $region49
    $region48: #{sac_actor_forward.1} parent=1 // pred_region
      %s1319 = ssub.s32 16, 16
      %1320 = vsyncadd [#allocation5], %s1319
      %s1322 = sshll.u32 [#allocation4], 4
      %s1323 = int_to_ptr.vmem [resolvable:$true] %s1322
      %1325 = dma.vmem_to_hbm [thread:$0]  %s1323, 16, %s11, [#allocation5]
    $region49: #{sac_actor_forward.1} parent=1 // pred_fallthru
      _
    // Predicated region
    $region50: #{sac_actor_forward.1} parent=1 // pred_check
      _
    $region51: #{sac_actor_forward.1} parent=1 // pred_check_branch
      %1327 = sbr.rel (0) target = $region53
    $region52: #{sac_actor_forward.1} parent=1 // pred_region
      %1328 = dma.done [#allocation3], 128
    $region53: #{sac_actor_forward.1} parent=1 // pred_fallthru
      _
    // Predicated region
    $region54: #{sac_actor_forward.1} parent=1 // pred_check
      _
    $region55: #{sac_actor_forward.1} parent=1 // pred_check_branch
      %1330 = sbr.rel (0) target = $region57
    $region56: #{sac_actor_forward.1} parent=1 // pred_region
      %1331 = dma.done [#allocation5], 16
    $region57: #{sac_actor_forward.1} parent=1 // pred_fallthru
      _
    %1332 = vsyncpa [#allocation3], 1
    %1333 = vsyncpa [#allocation5], 1

</llo_original>
